<compile_context>
chip_gen: v7x
topology: tpu7x:2x2x1
jax: 0.10.0
libtpu: 0.0.40
codegen_flags: <defaults>
</compile_context>

<pallas_src>
import functools

import jax
import jax.numpy as jnp
from jax import lax
from jax.experimental import pallas as pl
from jax.experimental.pallas import tpu as pltpu

_LANE = 128                      # vreg lane width
_RCHUNK = 128                    # rows per inner compute chunk (keeps carries <= 16 vregs f32)
_MAX_ACC_ROWS = 2048             # cap on cross-step f32 accumulator rows (<= 1 MiB scratch)
_BLOCK_BYTES = 8 * 1024 * 1024   # per-input-block DMA budget (x2 for double buffering)


def _round_up(x, m):
    return ((x + m - 1) // m) * m


def _pick_hw_tile(hw, max_elems):
    """Largest multiple-of-128 divisor of hw that is <= max_elems, else hw itself."""
    if hw <= max_elems:
        return hw
    t = (max_elems // _LANE) * _LANE
    while t >= _LANE:
        if hw % t == 0:
            return t
        t -= _LANE
    # TODO(synk): no multiple-of-128 divisor under the budget (huge prime-ish HW);
    # fall back to the exact full extent, which may overshoot the block budget.
    return hw


def _select_tiles(r, hw, itemsize):
    """Pick (row_tile, row_chunk, hw_tile, num_k_steps) for x viewed as (R, HW)."""
    grain = max(8, 32 // itemsize)            # dtype-aware sublane grain: f32 8, bf16 16, i8 32
    max_hw = max(_LANE, _BLOCK_BYTES // (max(_RCHUNK, grain) * itemsize))
    hwt = _pick_hw_tile(hw, max_hw)           # always divides hw (or equals it)
    nk = hw // hwt

    rt = max(grain, _BLOCK_BYTES // (hwt * itemsize))   # fill the byte budget with rows
    if nk > 1:
        rt = min(rt, _MAX_ACC_ROWS)           # bound the cross-step f32 accumulator
    if r >= 2 * grain:
        # keep >= 2 row blocks so the v7x megacore can shard the parallel axis
        rt = min(rt, _round_up(-(-r // 2), grain))
        if rt >= _RCHUNK:
            rt = (rt // _RCHUNK) * _RCHUNK
        else:
            rt = (rt // grain) * grain
    else:
        rt = max(1, min((rt // grain) * grain, r))

    rchunk = min(_RCHUNK, rt)
    assert rt % rchunk == 0
    return rt, rchunk, hwt, nk


def _gap_kernel(x_ref, o_ref, acc_ref, *, inv_hw, rchunk, nk, n_row_chunks):
    """One (rt, hwt) row/spatial tile.

    x_ref  : (rt, hwt)        input tile (original dtype)
    o_ref  : (rt, 1)          per-row mean; written once per row block
    acc_ref: (acc_rows, 128)  f32 lane-partial sums (only used when nk > 1)
    """
    hwt = x_ref.shape[1]
    n_full = hwt // _LANE
    rem = hwt - n_full * _LANE
    unroll = max(1, min(n_full, 4))

    def lane_partial(r0):
        """f32 (rchunk, 128) lane-preserving VPU sum of all full 128-lane chunks."""
        rows = pl.ds(r0, rchunk)

        def body(i, p):
            start = pl.multiple_of(i * _LANE, _LANE)
            return p + x_ref[rows, pl.ds(start, _LANE)].astype(jnp.float32)

        return lax.fori_loop(0, n_full, body,
                             jnp.zeros((rchunk, _LANE), jnp.float32),
                             unroll=unroll)

    def tail_sum(r0):
        """f32 (rchunk, 1) sum over the trailing rem (<128) lanes."""
        t = x_ref[pl.ds(r0, rchunk), pl.ds(n_full * _LANE, rem)].astype(jnp.float32)
        return jnp.sum(t, axis=1, keepdims=True)

    def for_each_row_chunk(fn):
        if n_row_chunks == 1:
            fn(0)
        else:
            @pl.loop(0, n_row_chunks)
            def _(i):
                fn(pl.multiple_of(i * rchunk, rchunk))

    if nk == 1:
        # Single spatial pass: reduce each row chunk fully and store directly.
        def do_chunk(r0):
            if n_full > 0:
                s = jnp.sum(lane_partial(r0), axis=1, keepdims=True)   # one XLU reduce
                if rem > 0:
                    s = s + tail_sum(r0)
            else:
                s = tail_sum(r0)
            o_ref[pl.ds(r0, rchunk), :] = (s * inv_hw).astype(o_ref.dtype)

        for_each_row_chunk(do_chunk)
    else:
        # Multi-step spatial reduction; the wrapper guarantees rem == 0 here
        # (hwt is a multiple of 128), so there is no tail to double-count.
        k = pl.program_id(1)

        @pl.when(k == 0)
        def _init():
            acc_ref[...] = jnp.zeros_like(acc_ref)

        def accumulate(r0):
            acc_ref[pl.ds(r0, rchunk), :] += lane_partial(r0)

        for_each_row_chunk(accumulate)

        @pl.when(k == nk - 1)
        def _finalize():
            def store(r0):
                s = jnp.sum(acc_ref[pl.ds(r0, rchunk), :], axis=1, keepdims=True)
                o_ref[pl.ds(r0, rchunk), :] = (s * inv_hw).astype(o_ref.dtype)

            for_each_row_chunk(store)


def global_avg_pool2d(x):
    """x: (N, C, H, W) -> (N, C), mean over H, W (== F.avg_pool2d(x, x.shape[2:]).view(-1, C))."""
    n, c, h, w = x.shape
    hw = h * w
    r = n * c
    xf = x.reshape(r, hw)                        # free for contiguous NCHW

    itemsize = jnp.dtype(x.dtype).itemsize
    rt, rchunk, hwt, nk = _select_tiles(r, hw, itemsize)

    # Exact coverage of the reduction axis; tail lanes only exist when nk == 1.
    assert hw % hwt == 0
    assert nk == 1 or hwt % _LANE == 0

    n_row_chunks = rt // rchunk
    acc_rows = rt if nk > 1 else rchunk          # scratch only used when nk > 1

    block_bytes = rt * hwt * itemsize
    vmem_limit = int(min(48 * 1024 * 1024,
                         max(32 * 1024 * 1024, 2 * block_bytes + 4 * 1024 * 1024)))

    grid = (pl.cdiv(r, rt), nk)                  # rows parallel, HW reduction last

    kernel = functools.partial(
        _gap_kernel, inv_hw=1.0 / float(hw), rchunk=rchunk, nk=nk,
        n_row_chunks=n_row_chunks)

    out = pl.pallas_call(
        kernel,
        out_shape=jax.ShapeDtypeStruct((r, 1), x.dtype),
        grid=grid,
        in_specs=[pl.BlockSpec((rt, hwt), lambda i, k: (i, k))],
        out_specs=pl.BlockSpec((rt, 1), lambda i, k: (i, 0)),
        scratch_shapes=[pltpu.VMEM((acc_rows, _LANE), jnp.float32)],
        compiler_params=pltpu.CompilerParams(
            dimension_semantics=("parallel", "arbitrary"),
            vmem_limit_bytes=vmem_limit,
        ),
    )(xf)
    return out.reshape(n, c)


if __name__ == "__main__":
    key = jax.random.PRNGKey(0)

    # Small shape consistent with the module (single-pass spatial path).
    x = jax.random.normal(key, (2, 4, 16, 16), dtype=jnp.float32)
    out = global_avg_pool2d(x)
    out = jax.block_until_ready(out)
    ref = jnp.mean(x, axis=(2, 3)).reshape(-1, x.shape[1])
    assert out.shape == (2, 4), out.shape
    assert jnp.allclose(out, ref, atol=1e-5, rtol=1e-5), (out, ref)

    # Secondary check exercising the multi-step (nk > 1) spatial-reduction path.
    x2 = jax.random.normal(jax.random.PRNGKey(0), (2, 4, 160, 160), dtype=jnp.float32)
    out2 = jax.block_until_ready(global_avg_pool2d(x2))
    ref2 = jnp.mean(x2, axis=(2, 3)).reshape(-1, x2.shape[1])
    assert out2.shape == (2, 4), out2.shape
    assert jnp.allclose(out2, ref2, atol=1e-5, rtol=1e-5), (out2, ref2)

    print("KERNEL_OK")
</pallas_src>

<mosaic_0001>
module attributes {stable_mosaic.version = 11 : i64} {
  func.func @_gap_kernel(%arg0: i32, %arg1: i32, %arg2: memref<8x256xf32, #tpu.memory_space<vmem>>, %arg3: memref<8x1xf32, #tpu.memory_space<vmem>>, %arg4: memref<8x128xf32, #tpu.memory_space<vmem>>) attributes {dimension_semantics = [#tpu.dimension_semantics<parallel>, #tpu.dimension_semantics<arbitrary>], iteration_bounds = array<i64: 1, 1>, scalar_prefetch = 0 : i64, scratch_operands = 1 : i64, tpu.core_type = #tpu.core_type<tc>, window_params = [{transform_indices = @transform_0, window_bounds = array<i64: 8, 256>}, {transform_indices = @transform_1, window_bounds = array<i64: 8, 1>}]} {
    %cst = arith.constant 0.000000e+00 : f32
    %0 = vector.broadcast %cst : f32 to vector<8x128xf32>
    %c0_i32 = arith.constant 0 : i32
    %c128_i32 = arith.constant 128 : i32
    %1 = arith.muli %c0_i32, %c128_i32 : i32
    %2 = tpu.assume_multiple %1, 128 : i32
    %c0 = arith.constant 0 : index
    %3 = arith.index_cast %2 : i32 to index
    %4 = vector.load %arg2[%c0, %3] : memref<8x256xf32, #tpu.memory_space<vmem>>, vector<8x128xf32>
    %5 = arith.addf %0, %4 : vector<8x128xf32>
    %c1_i32 = arith.constant 1 : i32
    %c128_i32_0 = arith.constant 128 : i32
    %6 = arith.muli %c1_i32, %c128_i32_0 : i32
    %7 = tpu.assume_multiple %6, 128 : i32
    %c0_1 = arith.constant 0 : index
    %8 = arith.index_cast %7 : i32 to index
    %9 = vector.load %arg2[%c0_1, %8] : memref<8x256xf32, #tpu.memory_space<vmem>>, vector<8x128xf32>
    %10 = arith.addf %5, %9 : vector<8x128xf32>
    %c2_i32 = arith.constant 2 : i32
    %cst_2 = arith.constant dense<0.000000e+00> : vector<8xf32>
    %11 = vector.multi_reduction <add>, %10, %cst_2 [1] : vector<8x128xf32> to vector<8xf32>
    %12 = vector.shape_cast %11 : vector<8xf32> to vector<8x1xf32>
    %cst_3 = arith.constant 3.906250e-03 : f32
    %13 = vector.broadcast %cst_3 : f32 to vector<8x1xf32>
    %14 = arith.mulf %12, %13 : vector<8x1xf32>
    %c0_4 = arith.constant 0 : index
    %c0_5 = arith.constant 0 : index
    %15 = vector.load %arg3[%c0_4, %c0_5] : memref<8x1xf32, #tpu.memory_space<vmem>>, vector<8x1xf32>
    tpu.vector_store %arg3[%c0_4, %c0_5], %14 {strides = array<i32>} : memref<8x1xf32, #tpu.memory_space<vmem>>, vector<8x1xf32>,
    return
  }
  func.func @transform_0(%arg0: i32, %arg1: i32) -> (i32, i32) {
    %c0_i32 = arith.constant 0 : i32
    return %arg0, %arg1 : i32, i32
  }
  func.func @transform_1(%arg0: i32, %arg1: i32) -> (i32, i32) {
    %c0_i32 = arith.constant 0 : i32
    %c0_i32_0 = arith.constant 0 : i32
    return %arg0, %c0_i32 : i32, i32
  }
}

</mosaic_0001>

<llo_original>
// kernel: tpu_custom_call.1
$region0: #{tpu_custom_call.1}
  #allocation0 [shape = 'u32[]', space=smem, size = 0x4, offset = 0x4, fixed_abs, tag = 'smem constant byte address 0x4 - core index']
  #allocation1 [shape = 'u32[144,128]{1,0:T(1,128)}', space=vmem, size = 0x12000, scoped, tag = 'internal scratch']
  #allocation2 [shape = 'f32[8,128]{1,0:T(8,128)}', space=vmem, size = 0x1000, scoped, tag = 'scratch operand']
  %s0 = inlined_call_operand.hbm [shape: f32[8,256], index: 0, kind: input, shape index: {}]
  %s1 = inlined_call_operand.vmem [shape: f32[8,1], index: 1, kind: output, shape index: {}]
  %s2 = sld [smem:[#allocation0]]
  $region18: #{tpu_custom_call.1} parent=0
    _
  %s4 = ssub.s32 1, %s2
  %s5 = scalar_select 0, %s4, %s2
  $region1: #{tpu_custom_call.1} parent=0
    #allocation3 [shape = 'u8[8192]{0}', space=vmem, size = 0x2000, scoped, tag = 'input window, operand 0, single buffered']
    #allocation4 [shape = 's32[1]{0}', space=sflag, size = 0x4, scoped, tag = 'scoped memory for tpu_custom_call.1']
    %6 = vsyncpa [#allocation4], 0
    // Predicated region
    $region2: #{tpu_custom_call.1} parent=1 // pred_check
      _
    $region3: #{tpu_custom_call.1} parent=1 // pred_check_branch
      %8 = sbr.rel (0) target = $region5
    $region4: #{tpu_custom_call.1} parent=1 // pred_region
      %s10 = ssub.s32 256, 256
      %11 = vsyncadd [#allocation4], %s10
      %s13 = sshll.u32 [#allocation3], 4
      %s14 = int_to_ptr.vmem [resolvable:$true] %s13
      %16 = dma.hbm_to_vmem [thread:$0]  %s0, 256, %s14, [#allocation4]
    $region5: #{tpu_custom_call.1} parent=1 // pred_fallthru
      _
    // Predicated region
    $region6: #{tpu_custom_call.1} parent=1 // pred_check
      _
    $region7: #{tpu_custom_call.1} parent=1 // pred_check_branch
      %18 = sbr.rel (0) target = $region9
    $region8: #{tpu_custom_call.1} parent=1 // pred_region
      %19 = dma.done [#allocation4], 256
    $region9: #{tpu_custom_call.1} parent=1 // pred_fallthru
      _
    %v20 = vld [vmem:[#allocation3] sm:$0xff]
    %v21 = vadd.f32 %v20, 0.0
    %s22 = scalar_lea.vmem [#allocation3], 8
    %v23 = vld [vmem:[%s22] sm:$0xff]
    %v24 = vadd.f32 %v21, %v23
    %25 = vadd.xlane.f32.xlu0 %v24
    %v26 = vpop.xlane.xlu0 %25
    %v27 = vmul.f32 %v26, 0.00390625
    %vm28 = vcmask 7168
    %29 = vst.msk [vmem:[%s1] sm:$0xff] %vm28, %v27
    // Predicated region
    $region10: #{tpu_custom_call.1} parent=1 // pred_check
      _
    $region11: #{tpu_custom_call.1} parent=1 // pred_check_branch
      %31 = sbr.rel (0) target = $region13
    $region12: #{tpu_custom_call.1} parent=1 // pred_region
      _
    $region13: #{tpu_custom_call.1} parent=1 // pred_fallthru
      _
    // Predicated region
    $region14: #{tpu_custom_call.1} parent=1 // pred_check
      _
    $region15: #{tpu_custom_call.1} parent=1 // pred_check_branch
      %33 = sbr.rel (0) target = $region17
    $region16: #{tpu_custom_call.1} parent=1 // pred_region
      _
    $region17: #{tpu_custom_call.1} parent=1 // pred_fallthru
      _
    %34 = vsyncpa [#allocation4], 1

</llo_original>
